<compile_context>
chip_gen: v6e
topology: v6e:2x2x1
jax: 0.10.0
libtpu: 0.0.40
codegen_flags: <defaults>
</compile_context>

<pallas_src>
import functools

import jax
import jax.numpy as jnp
from jax import lax
from jax.experimental import pallas as pl
from jax.experimental.pallas import tpu as pltpu


def _round_up(x, m):
    return ((x + m - 1) // m) * m


def _ce_label_smooth_kernel(logits_ref, targets_ref, loss_ref, *,
                            epsilon, num_valid_rows, tile_rows, needs_mask):
    # logits_ref : (TB, C) VMEM     targets_ref : (TB, 1) int32 VMEM
    # loss_ref   : (TB, 1) f32 VMEM -- per-row smoothed-CE loss for this tile.
    x = logits_ref[...].astype(jnp.float32)                     # (TB, C)
    TB, C = x.shape
    tgt = targets_ref[...]                                      # (TB, 1) int32

    # Row reductions (XLU) + one EUP exp.  Algebraic form of the smoothed CE:
    #   loss_row = (x_max + lse) - (1-eps)*x[tgt] - (eps/C)*sum_c(x)
    x_max = jnp.max(x, axis=-1, keepdims=True)                  # (TB, 1)
    lse = jnp.log(jnp.sum(jnp.exp(x - x_max), axis=-1, keepdims=True))
    row_sum = jnp.sum(x, axis=-1, keepdims=True)                # (TB, 1)

    # x[target] via a vectorized select-reduce (no gather / no scatter).
    # Out-of-range targets give 0 here (degenerates to the uniform term),
    # unlike PyTorch's scatter_ which would error.
    col = lax.broadcasted_iota(jnp.int32, (TB, C), 1)
    x_tgt = jnp.sum(jnp.where(col == tgt, x, jnp.float32(0.0)),
                    axis=-1, keepdims=True)                     # (TB, 1)

    one_m_eps = jnp.float32(1.0 - epsilon)
    eps_over_c = jnp.float32(epsilon / C)
    loss_rows = (x_max + lse) - one_m_eps * x_tgt - eps_over_c * row_sum

    if needs_mask:
        # Zero out rows past the true batch (batch was padded to a tile multiple).
        row_idx = (pl.program_id(0) * tile_rows
                   + lax.broadcasted_iota(jnp.int32, (TB, 1), 0))
        loss_rows = jnp.where(row_idx < num_valid_rows, loss_rows,
                              jnp.float32(0.0))

    loss_ref[...] = loss_rows


def ce_label_smooth(logits, targets, epsilon=0.1, reduction=True,
                    tile_rows=None):
    """logits: (B, C) pre-softmax scores; targets: (B,) int labels.

    Returns the scalar mean loss (reduction=True, PyTorch default) or the
    per-sample (B,) loss vector (reduction=False).
    """
    B, C = logits.shape

    if tile_rows is None:
        # Double-buffered f32 logits tile: keep 2 * TB * C * 4 B <= ~16 MiB,
        # well under the 32 MiB default scoped-VMEM limit (v7x-safe).
        budget_bytes = 8 * 1024 * 1024
        tb = max(8, min(512, budget_bytes // (C * 4)))
        tile_rows = min((tb // 8) * 8, _round_up(B, 8))
    tile_rows = max(8, (tile_rows // 8) * 8)

    b_pad = _round_up(B, tile_rows)
    num_tiles = b_pad // tile_rows
    needs_mask = b_pad != B

    tgt2d = targets.astype(jnp.int32).reshape(B, 1)
    if needs_mask:
        logits = jnp.pad(logits, ((0, b_pad - B), (0, 0)))
        tgt2d = jnp.pad(tgt2d, ((0, b_pad - B), (0, 0)))

    kernel = functools.partial(
        _ce_label_smooth_kernel, epsilon=float(epsilon),
        num_valid_rows=B, tile_rows=tile_rows, needs_mask=needs_mask)

    per_row = pl.pallas_call(
        kernel,
        out_shape=jax.ShapeDtypeStruct((b_pad, 1), jnp.float32),
        grid=(num_tiles,),
        in_specs=[
            pl.BlockSpec((tile_rows, C), lambda i: (i, 0)),
            pl.BlockSpec((tile_rows, 1), lambda i: (i, 0)),
        ],
        out_specs=pl.BlockSpec((tile_rows, 1), lambda i: (i, 0)),
        compiler_params=pltpu.CompilerParams(
            dimension_semantics=("parallel",)),
        cost_estimate=pl.CostEstimate(
            flops=6 * b_pad * C,
            transcendentals=b_pad * C,
            bytes_accessed=b_pad * C * logits.dtype.itemsize + b_pad * 8),
    )(logits, tgt2d)

    # TODO(synk): for vocab-scale C that doesn't fit a (TB, C) VMEM tile, add an
    # inner "arbitrary" grid axis over C with online logsumexp / running x[tgt]
    # and row-sum scratch accumulators.

    if reduction:
        # 1/B applied ONCE over the true batch size (padded rows contribute 0).
        return jnp.sum(per_row) * jnp.float32(1.0 / B)
    return per_row[:B, 0]


def _reference_loss(logits, targets, epsilon=0.1):
    """Pure-JAX reference mirroring the PyTorch forward, for verification."""
    B, C = logits.shape
    log_probs = jax.nn.log_softmax(logits.astype(jnp.float32), axis=1)
    onehot = jax.nn.one_hot(targets, C, dtype=jnp.float32)
    t = (1.0 - epsilon) * onehot + epsilon / C
    return jnp.mean(jnp.sum(-t * log_probs, axis=1))


if __name__ == "__main__":
    # Shapes implied by the forward: inputs (batch_size, num_classes),
    # targets (batch_size,).  C=128 keeps the class axis lane-dense; B=20 is
    # deliberately not a multiple of 8 so the pad+mask path is exercised.
    B, C = 20, 128
    key = jax.random.PRNGKey(0)
    k1, k2 = jax.random.split(key)
    logits = jax.random.normal(k1, (B, C), dtype=jnp.float32)
    targets = jax.random.randint(k2, (B,), 0, C, dtype=jnp.int32)

    # Multi-tile path (grid of 3 tiles of 8 rows, last tile masked) ...
    loss_tiled = jax.block_until_ready(
        ce_label_smooth(logits, targets, epsilon=0.1, tile_rows=8))
    # ... and the default auto-sized tile path.
    loss_default = jax.block_until_ready(
        ce_label_smooth(logits, targets, epsilon=0.1))
    ref = jax.block_until_ready(_reference_loss(logits, targets, epsilon=0.1))

    assert jnp.allclose(loss_tiled, ref, rtol=1e-5, atol=1e-6), (loss_tiled, ref)
    assert jnp.allclose(loss_default, ref, rtol=1e-5, atol=1e-6), (loss_default, ref)
    print("KERNEL_OK")
</pallas_src>

<mosaic_0001>
module attributes {stable_mosaic.version = 11 : i64} {
  func.func @_ce_label_smooth_kernel(%arg0: i32, %arg1: memref<8x128xf32, #tpu.memory_space<vmem>>, %arg2: memref<8x1xi32, #tpu.memory_space<vmem>>, %arg3: memref<8x1xf32, #tpu.memory_space<vmem>>) attributes {dimension_semantics = [#tpu.dimension_semantics<parallel>], iteration_bounds = array<i64: 3>, scalar_prefetch = 0 : i64, scratch_operands = 0 : i64, tpu.core_type = #tpu.core_type<tc>, window_params = [{transform_indices = @transform_0, window_bounds = array<i64: 8, 128>}, {transform_indices = @transform_1, window_bounds = array<i64: 8, 1>}, {transform_indices = @transform_2, window_bounds = array<i64: 8, 1>}]} {
    %c0 = arith.constant 0 : index
    %c0_0 = arith.constant 0 : index
    %0 = vector.load %arg1[%c0, %c0_0] : memref<8x128xf32, #tpu.memory_space<vmem>>, vector<8x128xf32>
    %c0_1 = arith.constant 0 : index
    %c0_2 = arith.constant 0 : index
    %1 = vector.load %arg2[%c0_1, %c0_2] : memref<8x1xi32, #tpu.memory_space<vmem>>, vector<8x1xi32>
    %cst = arith.constant dense<0xFF800000> : vector<8xf32>
    %2 = vector.multi_reduction <maximumf>, %0, %cst [1] : vector<8x128xf32> to vector<8xf32>
    %3 = vector.shape_cast %2 : vector<8xf32> to vector<8x1xf32>
    %4 = vector.broadcast %3 : vector<8x1xf32> to vector<8x128xf32>
    %5 = arith.subf %0, %4 : vector<8x128xf32>
    %6 = math.exp %5 : vector<8x128xf32>
    %cst_3 = arith.constant dense<0.000000e+00> : vector<8xf32>
    %7 = vector.multi_reduction <add>, %6, %cst_3 [1] : vector<8x128xf32> to vector<8xf32>
    %8 = vector.shape_cast %7 : vector<8xf32> to vector<8x1xf32>
    %9 = math.log %8 : vector<8x1xf32>
    %cst_4 = arith.constant dense<0.000000e+00> : vector<8xf32>
    %10 = vector.multi_reduction <add>, %0, %cst_4 [1] : vector<8x128xf32> to vector<8xf32>
    %11 = vector.shape_cast %10 : vector<8xf32> to vector<8x1xf32>
    %12 = tpu.iota {dimensions = array<i32: 1>} : vector<8x128xi32>
    %13 = vector.broadcast %1 : vector<8x1xi32> to vector<8x128xi32>
    %14 = arith.cmpi eq, %12, %13 : vector<8x128xi32>
    %cst_5 = arith.constant 0.000000e+00 : f32
    %15 = vector.broadcast %cst_5 : f32 to vector<8x128xf32>
    %16 = arith.select %14, %0, %15 : vector<8x128xi1>, vector<8x128xf32>
    %cst_6 = arith.constant dense<0.000000e+00> : vector<8xf32>
    %17 = vector.multi_reduction <add>, %16, %cst_6 [1] : vector<8x128xf32> to vector<8xf32>
    %18 = vector.shape_cast %17 : vector<8xf32> to vector<8x1xf32>
    %19 = arith.addf %3, %9 : vector<8x1xf32>
    %cst_7 = arith.constant 0.899999976 : f32
    %20 = vector.broadcast %cst_7 : f32 to vector<8x1xf32>
    %21 = arith.mulf %20, %18 : vector<8x1xf32>
    %22 = arith.subf %19, %21 : vector<8x1xf32>
    %cst_8 = arith.constant 7.812500e-04 : f32
    %23 = vector.broadcast %cst_8 : f32 to vector<8x1xf32>
    %24 = arith.mulf %23, %11 : vector<8x1xf32>
    %25 = arith.subf %22, %24 : vector<8x1xf32>
    %c8_i32 = arith.constant 8 : i32
    %26 = arith.muli %arg0, %c8_i32 : i32
    %27 = tpu.iota {dimensions = array<i32: 0>} : vector<8x1xi32>
    %28 = vector.broadcast %26 : i32 to vector<8x1xi32>
    %29 = arith.addi %28, %27 : vector<8x1xi32>
    %c20_i32 = arith.constant 20 : i32
    %30 = vector.broadcast %c20_i32 : i32 to vector<8x1xi32>
    %31 = arith.cmpi slt, %29, %30 : vector<8x1xi32>
    %cst_9 = arith.constant 0.000000e+00 : f32
    %32 = vector.broadcast %cst_9 : f32 to vector<8x1xf32>
    %33 = arith.select %31, %25, %32 : vector<8x1xi1>, vector<8x1xf32>
    %c0_10 = arith.constant 0 : index
    %c0_11 = arith.constant 0 : index
    %34 = vector.load %arg3[%c0_10, %c0_11] : memref<8x1xf32, #tpu.memory_space<vmem>>, vector<8x1xf32>
    tpu.vector_store %arg3[%c0_10, %c0_11], %33 {strides = array<i32>} : memref<8x1xf32, #tpu.memory_space<vmem>>, vector<8x1xf32>,
    return
  }
  func.func @transform_0(%arg0: i32) -> (i32, i32) {
    %c0_i32 = arith.constant 0 : i32
    %c0_i32_0 = arith.constant 0 : i32
    return %arg0, %c0_i32 : i32, i32
  }
  func.func @transform_1(%arg0: i32) -> (i32, i32) {
    %c0_i32 = arith.constant 0 : i32
    %c0_i32_0 = arith.constant 0 : i32
    return %arg0, %c0_i32 : i32, i32
  }
  func.func @transform_2(%arg0: i32) -> (i32, i32) {
    %c0_i32 = arith.constant 0 : i32
    %c0_i32_0 = arith.constant 0 : i32
    return %arg0, %c0_i32 : i32, i32
  }
}

</mosaic_0001>

<llo_original>
// kernel: tpu_custom_call.1
$region0: #{tpu_custom_call.1}
  #allocation0 [shape = 'u32[]', space=smem, size = 0x4, offset = 0x4, fixed_abs, tag = 'smem constant byte address 0x4 - core index']
  #allocation1 [shape = 'u32[144,128]{1,0:T(1,128)}', space=vmem, size = 0x12000, scoped, tag = 'internal scratch']
  %s0 = inlined_call_operand.vmem [shape: f32[24,128], index: 0, kind: input, shape index: {}]
  %s1 = inlined_call_operand.vmem [shape: s32[24,1], index: 1, kind: input, shape index: {}]
  %s2 = inlined_call_operand.vmem [shape: f32[24,1], index: 2, kind: output, shape index: {}]
  %s3 = sld [smem:[#allocation0]]
  $region41: #{tpu_custom_call.1} parent=0
    _
  %s5 = ssub.s32 1, %s3
  %s6 = scalar_select 0, %s5, %s3
  loop: start=0, step=1, limit=5
  $region2: #{tpu_custom_call.1} parent=0 // loop_pre_header
    _
  $region3: #{tpu_custom_call.1} parent=0 // loop_header
    %s8 = sphi 0, %s12
    %p9 = scmp.ge.s32.totalorder %s8, 5
    %s18 = sphi 0, %s20
    %s21 = sphi 0, %s18
    %s22 = sphi 0, %s21
    %s38 = sphi 0, %s22
    %s44 = sphi 0, %s46
    %s47 = sphi 0, %s44
    %s48 = sphi 0, %s47
    %s64 = sphi 0, %s48
    %s70 = sphi 0, %s72
    %s73 = sphi 0, %s70
    %s74 = sphi 0, %s73
    %s90 = sphi 0, %s74
  $region4: #{tpu_custom_call.1} parent=0 // loop_header_branch
    %11 = sbr.rel (%p9) target = $region8
  $region5: #{tpu_custom_call.1} parent=0 // loop_body
    %s13 = ssub.s32 %s8, 1
    %s14 = ssub.s32 %s8, 2
    %s15 = sadd.s32 %s8, 1
    %s16 = ssub.s32 %s8, %s15
    %p17 = scmp.eq.s32.totalorder %s16, 0
    %s19 = sadd.s32 %s18, 1
    %s20 = scalar_select %p17, %s18, %s19
    %p23 = pneg %p17
    %p24 = scmp.eq.s32.totalorder %s8, 2
    %p25 = por %p23, %p24
    %p26 = scmp.ne.s32.totalorder %s18, %s21
    %p27 = scmp.eq.s32.totalorder %s8, 0
    %p28 = por %p26, %p27
    %p29 = scmp.ne.s32.totalorder %s18, %s21
    %p30 = scmp.eq.s32.totalorder %s13, 2
    %p31 = por %p29, %p30
    %p32 = scmp.ne.s32.totalorder %s21, %s22
    %p33 = scmp.eq.s32.totalorder %s13, 0
    %p34 = por %p32, %p33
    %p35 = scmp.ne.s32.totalorder %s21, %s22
    %p36 = scmp.eq.s32.totalorder %s14, 2
    %p37 = por %p35, %p36
    %p39 = scmp.ne.s32.totalorder %s22, %s38
    %p40 = scmp.eq.s32.totalorder %s14, 0
    %p41 = por %p39, %p40
    %s42 = ssub.s32 %s8, %s15
    %p43 = scmp.eq.s32.totalorder %s42, 0
    %s45 = sadd.s32 %s44, 1
    %s46 = scalar_select %p43, %s44, %s45
    %p49 = pneg %p43
    %p50 = scmp.eq.s32.totalorder %s8, 2
    %p51 = por %p49, %p50
    %p52 = scmp.ne.s32.totalorder %s44, %s47
    %p53 = scmp.eq.s32.totalorder %s8, 0
    %p54 = por %p52, %p53
    %p55 = scmp.ne.s32.totalorder %s44, %s47
    %p56 = scmp.eq.s32.totalorder %s13, 2
    %p57 = por %p55, %p56
    %p58 = scmp.ne.s32.totalorder %s47, %s48
    %p59 = scmp.eq.s32.totalorder %s13, 0
    %p60 = por %p58, %p59
    %p61 = scmp.ne.s32.totalorder %s47, %s48
    %p62 = scmp.eq.s32.totalorder %s14, 2
    %p63 = por %p61, %p62
    %p65 = scmp.ne.s32.totalorder %s48, %s64
    %p66 = scmp.eq.s32.totalorder %s14, 0
    %p67 = por %p65, %p66
    %s68 = ssub.s32 %s8, %s15
    %p69 = scmp.eq.s32.totalorder %s68, 0
    %s71 = sadd.s32 %s70, 1
    %s72 = scalar_select %p69, %s70, %s71
    %p75 = pneg %p69
    %p76 = scmp.eq.s32.totalorder %s8, 2
    %p77 = por %p75, %p76
    %p78 = scmp.ne.s32.totalorder %s70, %s73
    %p79 = scmp.eq.s32.totalorder %s8, 0
    %p80 = por %p78, %p79
    %p81 = scmp.ne.s32.totalorder %s70, %s73
    %p82 = scmp.eq.s32.totalorder %s13, 2
    %p83 = por %p81, %p82
    %p84 = scmp.ne.s32.totalorder %s73, %s74
    %p85 = scmp.eq.s32.totalorder %s13, 0
    %p86 = por %p84, %p85
    %p87 = scmp.ne.s32.totalorder %s73, %s74
    %p88 = scmp.eq.s32.totalorder %s14, 2
    %p89 = por %p87, %p88
    %p91 = scmp.ne.s32.totalorder %s74, %s90
    %p92 = scmp.eq.s32.totalorder %s14, 0
    %p93 = por %p91, %p92
    %p94 = scmp.le.s32.totalorder 1, %s8
    %p95 = scmp.lt.s32.totalorder %s8, 4
    %p96 = pnand %p94, %p95
    %p97 = pneg %p96
    // Predicated region
    $region9: #{tpu_custom_call.1} parent=5 // pred_check
      _
    $region10: #{tpu_custom_call.1} parent=5 // pred_check_branch
      %99 = sbr.rel (%p96) target = $region12
    $region11: #{tpu_custom_call.1} parent=5 // pred_region
      %s100 = ssub.s32 %s8, 1
    $region12: #{tpu_custom_call.1} parent=5 // pred_fallthru
      _
    %p101 = scmp.lt.s32.totalorder %s8, 3
    // Predicated region
    $region13: #{tpu_custom_call.1} parent=5 // pred_check
      %p102 = pneg %p101
    $region14: #{tpu_custom_call.1} parent=5 // pred_check_branch
      %104 = sbr.rel (%p102) target = $region16
    $region15: #{tpu_custom_call.1} parent=5 // pred_region
      // Predicated region
      $region17: #{tpu_custom_call.1} parent=15 // pred_check
        %p105 = pneg %p28
      $region18: #{tpu_custom_call.1} parent=15 // pred_check_branch
        %107 = sbr.rel (%p105) target = $region20
      $region19: #{tpu_custom_call.1} parent=15 // pred_region
        %p108 = scmp.lt.s32.totalorder %s8, 2
        %s109 = scalar_select %p108, %s8, 2
        %s110 = smul.addr %s109, 8
        %s111 = scalar_lea.vmem %s0, %s110
      $region20: #{tpu_custom_call.1} parent=15 // pred_fallthru
        _
      // Predicated region
      $region21: #{tpu_custom_call.1} parent=15 // pred_check
        %p112 = pneg %p54
      $region22: #{tpu_custom_call.1} parent=15 // pred_check_branch
        %114 = sbr.rel (%p112) target = $region24
      $region23: #{tpu_custom_call.1} parent=15 // pred_region
        %p115 = scmp.lt.s32.totalorder %s8, 2
        %s116 = scalar_select %p115, %s8, 2
        %s117 = smul.addr %s116, 8
        %s118 = scalar_lea.vmem %s1, %s117
      $region24: #{tpu_custom_call.1} parent=15 // pred_fallthru
        _
    $region16: #{tpu_custom_call.1} parent=5 // pred_fallthru
      _
    %p119 = scmp.le.s32.totalorder 1, %s8
    %p120 = scmp.lt.s32.totalorder %s8, 4
    %p121 = pnand %p119, %p120
    %p122 = pneg %p121
    // Predicated region
    $region25: #{tpu_custom_call.1} parent=5 // pred_check
      _
    $region26: #{tpu_custom_call.1} parent=5 // pred_check_branch
      %124 = sbr.rel (%p121) target = $region28
    $region27: #{tpu_custom_call.1} parent=5 // pred_region
      %s125 = ssub.s32 %s8, 1
      %p126 = scmp.lt.s32.totalorder %s13, 2
      %s127 = scalar_select %p126, %s13, 2
      %s128 = smul.addr %s127, 8
      %s129 = scalar_lea.vmem %s0, %s128
      %p130 = pneg %p34
      %p131 = pneg %p31
      %p132 = scmp.lt.s32.totalorder %s13, 2
      %s133 = scalar_select %p132, %s13, 2
      %s134 = smul.addr %s133, 8
      %s135 = scalar_lea.vmem %s1, %s134
      %p136 = pneg %p60
      %p137 = pneg %p57
      %p138 = pneg %p86
      %p139 = pneg %p83
      %p140 = scmp.lt.s32.totalorder %s13, 2
      %s141 = scalar_select %p140, %s13, 2
      %s142 = smul.addr %s141, 8
      %s143 = scalar_lea.vmem %s2, %s142
      %p144 = scmp.lt.s32.totalorder %s13, 2
      %s145 = scalar_select %p144, %s13, 2
      %s146 = smul.addr %s145, 8
      %s147 = scalar_lea.vmem %s0, %s146
      %p148 = scmp.lt.s32.totalorder %s13, 2
      %s149 = scalar_select %p148, %s13, 2
      %s150 = smul.addr %s149, 8
      %s151 = scalar_lea.vmem %s1, %s150
      %p152 = scmp.lt.s32.totalorder %s13, 2
      %s153 = scalar_select %p152, %s13, 2
      %s154 = smul.addr %s153, 8
      %s155 = scalar_lea.vmem %s2, %s154
      %v156 = vld [vmem:[%s147] sm:$0xff]
      %v157 = vld [vmem:[%s151] sm:$0xff]
      %158 = vmax.xlane.f32.xlu0 %v156
      %v159 = vpop.xlane.xlu0 %158
      %v160 = vsub.f32 %v156, %v159
      %v161 = vmul.f32 %v160, 1.442695
      %v162 = vpow.pop %v161
      %163 = vadd.xlane.f32.xlu0 %v162
      %v164 = vpop.xlane.xlu0 %163
      %v165 = vlog2.pop %v164
      %v166 = vmul.f32 %v165, 0.6931472
      %167 = vadd.xlane.f32.xlu0 %v156
      %v168 = vpop.xlane.xlu0 %167
      %v169 = vlaneseq
      %v170 = vand.u32 %v169, 127
      %171 = vset.pattern.permute.xlu0 0
      %172 = vperm.xlu0 %171, %v157
      %v173 = vpop.permute.xlu0 %172
      %vm174 = vcmp.eq.s32.totalorder %v170, %v173
      %v175 = vsel %vm174, %v156, 0.0
      %176 = vadd.xlane.f32.xlu0 %v175
      %v177 = vpop.xlane.xlu0 %176
      %v178 = vadd.f32 %v159, %v166
      %v179 = vmul.f32 %v177, 0.9
      %v180 = vsub.f32 %v178, %v179
      %v181 = vmul.f32 %v168, 0.00078125
      %v182 = vsub.f32 %v180, %v181
      %s183 = smul.u32 %s13, 8
      %v184 = vlaneseq
      %v185 = vshrl.u32 %v184, 7
      %v186 = vstv %s183
      %v187 = vadd.s32 %v186, %v185
      %vm188 = vcmp.lt.s32.totalorder %v187, 20
      %v189 = vsel %vm188, %v182, 0.0
      %vm190 = vcmask 7168
      %191 = vst.msk [vmem:[%s155] sm:$0xff] %vm190, %v189
      %p192 = scmp.lt.s32.totalorder %s13, 2
      %s193 = scalar_select %p192, %s13, 2
      %s194 = smul.addr %s193, 8
      %s195 = scalar_lea.vmem %s2, %s194
      // Predicated region
      $region29: #{tpu_custom_call.1} parent=27 // pred_check
        %p196 = pneg %p83
      $region30: #{tpu_custom_call.1} parent=27 // pred_check_branch
        %198 = sbr.rel (%p196) target = $region32
      $region31: #{tpu_custom_call.1} parent=27 // pred_region
        _
      $region32: #{tpu_custom_call.1} parent=27 // pred_fallthru
        _
    $region28: #{tpu_custom_call.1} parent=5 // pred_fallthru
      _
    %p199 = scmp.le.s32.totalorder 2, %s8
    // Predicated region
    $region33: #{tpu_custom_call.1} parent=5 // pred_check
      %p200 = pneg %p199
    $region34: #{tpu_custom_call.1} parent=5 // pred_check_branch
      %202 = sbr.rel (%p200) target = $region36
    $region35: #{tpu_custom_call.1} parent=5 // pred_region
      %s203 = ssub.s32 %s8, 2
      // Predicated region
      $region37: #{tpu_custom_call.1} parent=35 // pred_check
        %p204 = pneg %p89
      $region38: #{tpu_custom_call.1} parent=35 // pred_check_branch
        %206 = sbr.rel (%p204) target = $region40
      $region39: #{tpu_custom_call.1} parent=35 // pred_region
        %p207 = scmp.lt.s32.totalorder %s14, 2
        %s208 = scalar_select %p207, %s14, 2
        %s209 = smul.addr %s208, 8
        %s210 = scalar_lea.vmem %s2, %s209
      $region40: #{tpu_custom_call.1} parent=35 // pred_fallthru
        _
    $region36: #{tpu_custom_call.1} parent=5 // pred_fallthru
      _
  $region6: #{tpu_custom_call.1} parent=0 // loop_footer
    %s12 = sadd.s32 1, %s8
  $region7: #{tpu_custom_call.1} parent=0 // loop_footer_branch
    %7 = sbr.rel target = $region3
  $region8: #{tpu_custom_call.1} parent=0 // loop_exit
    _

</llo_original>
